<compile_context>
chip_gen: v5e
topology: v5e:2x2
jax: 0.10.0
libtpu: 0.0.40
codegen_flags: <defaults>
</compile_context>

<pallas_src>
import functools

import jax
import jax.numpy as jnp
from jax import lax
from jax.experimental import pallas as pl
from jax.experimental.pallas import tpu as pltpu

VOCAB_SIZE = 29
LANE = 128


def _round_up(n, m):
    return ((n + m - 1) // m) * m


def _pick_tile(batch, batch_tile):
    tb = min(batch_tile, _round_up(batch, 8))     # tb is a multiple of 8
    padded = _round_up(batch, tb)
    return tb, padded


def _rnn_hidden(x_tile, w_fused, w_hh_t, *, seq_len, tb):
    """Final hidden state of the bias-free tanh RNN for one batch tile.

    x_tile  : (tb, seq_len) int32 token ids
    w_fused : (29, H)  embedding @ W_ih^T   (f32 or bf16)
    w_hh_t  : (H, H)   W_hh^T               (f32 or bf16)
    returns : (tb, H)  f32
    """
    hidden = w_hh_t.shape[0]
    wdt = w_fused.dtype
    vocab_iota = lax.broadcasted_iota(jnp.int32, (tb, VOCAB_SIZE), 1)

    # Input projection pulled off the serial chain: seq_len *independent*
    # matmuls issued before the recurrence (scheduler overlaps them freely).
    xs = []
    for t in range(seq_len):
        onehot_t = (x_tile[:, t:t + 1] == vocab_iota).astype(wdt)
        xs.append(jnp.dot(onehot_t, w_fused,
                          preferred_element_type=jnp.float32))

    # Serial recurrence: per step only h @ w_hh_t + xt -> tanh.
    # TODO(synk): switch to lax.fori_loop(..., unroll=8) if seq_len grows large.
    h = jnp.zeros((tb, hidden), jnp.float32)
    for t in range(seq_len):
        h = jnp.tanh(xs[t] + jnp.dot(h.astype(w_hh_t.dtype), w_hh_t,
                                     preferred_element_type=jnp.float32))
    return h


def _classifier(h, w_cls_t, b_cls):
    return jnp.dot(h.astype(w_cls_t.dtype), w_cls_t,
                   preferred_element_type=jnp.float32) + b_cls


def _logits_kernel(x_ref, wfused_ref, whh_t_ref, wcls_t_ref, bcls_ref,
                   logits_ref, *, seq_len, tb):
    h = _rnn_hidden(x_ref[...], wfused_ref[...], whh_t_ref[...],
                    seq_len=seq_len, tb=tb)
    logits_ref[...] = _classifier(h, wcls_t_ref[...], bcls_ref[...])


def _loss_kernel(x_ref, y_ref, wfused_ref, whh_t_ref, wcls_t_ref, bcls_ref,
                 partial_ref, *, seq_len, tb, num_classes, batch):
    """Per-tile partial sum of (lse - picked); wrapper divides by batch."""
    h = _rnn_hidden(x_ref[...], wfused_ref[...], whh_t_ref[...],
                    seq_len=seq_len, tb=tb)
    logits = _classifier(h, wcls_t_ref[...], bcls_ref[...])       # (tb, c_pad)
    c_pad = logits.shape[-1]
    y = y_ref[...]                                                # (tb, 1)

    cls_iota = lax.broadcasted_iota(jnp.int32, (tb, c_pad), 1)
    # Mask zero-padded class columns out of the log-sum-exp.
    masked = jnp.where(cls_iota < num_classes, logits, jnp.float32(-1e30))
    m = jnp.max(masked, axis=-1, keepdims=True)
    lse = jnp.log(jnp.sum(jnp.exp(masked - m), axis=-1, keepdims=True)) + m
    picked = jnp.sum(jnp.where(cls_iota == y, logits, 0.0),
                     axis=-1, keepdims=True)

    # Mask zero-padded batch rows (global row index >= batch).
    row = pl.program_id(0) * tb + lax.broadcasted_iota(jnp.int32, (tb, 1), 0)
    per_row = jnp.where(row < batch, lse - picked, 0.0)
    # TODO(synk): ignore_index / label_smoothing of F.cross_entropy not modeled.
    partial_ref[...] = jnp.full(partial_ref.shape, jnp.sum(per_row),
                                jnp.float32)


def init_params(key, vector_dim, hidden_size, sen_len):
    """Deterministic synthetic parameters with the module's shapes."""
    num_classes = sen_len + 1
    k0, k1, k2, k3, k4 = jax.random.split(key, 5)
    return {
        "embedding": jax.random.normal(k0, (VOCAB_SIZE, vector_dim), jnp.float32),
        "w_ih": jax.random.uniform(k1, (hidden_size, vector_dim), jnp.float32,
                                   -0.1, 0.1),
        "w_hh": jax.random.uniform(k2, (hidden_size, hidden_size), jnp.float32,
                                   -0.1, 0.1),
        "w_cls": jax.random.uniform(k3, (num_classes, hidden_size), jnp.float32,
                                    -0.1, 0.1),
        "b_cls": jax.random.uniform(k4, (num_classes,), jnp.float32, -0.1, 0.1),
    }


def prepare_params(params, use_bf16=False):
    """One-time hoist: transposes/casts, embedding/W_ih fusion, lane-dense pad."""
    emb = params["embedding"].astype(jnp.float32)
    w_ih = params["w_ih"].astype(jnp.float32)
    w_hh = params["w_hh"].astype(jnp.float32)
    w_cls = params["w_cls"].astype(jnp.float32)
    b_cls = params["b_cls"].astype(jnp.float32)
    num_classes, hidden = w_cls.shape
    c_pad = _round_up(max(num_classes, LANE), LANE)

    w_fused = jnp.dot(emb, w_ih.T)                                 # (29, H)
    w_hh_t = w_hh.T                                                # (H, H)
    w_cls_t = jnp.zeros((hidden, c_pad), jnp.float32)
    w_cls_t = w_cls_t.at[:, :num_classes].set(w_cls.T)             # (H, c_pad)
    b_cls_p = jnp.zeros((1, c_pad), jnp.float32)
    b_cls_p = b_cls_p.at[:, :num_classes].set(b_cls[None, :])      # (1, c_pad)

    wdt = jnp.bfloat16 if use_bf16 else jnp.float32
    return {
        "w_fused": w_fused.astype(wdt),
        "w_hh_t": w_hh_t.astype(wdt),
        "w_cls_t": w_cls_t.astype(wdt),
        "b_cls": b_cls_p,                      # bias stays f32 (post-matmul add)
        "num_classes": num_classes,            # python int (kept out of jit args)
    }


@functools.partial(jax.jit, static_argnames=("num_classes", "batch_tile"))
def _forward_logits_jit(x, weights, num_classes, batch_tile=1024):
    batch, seq_len = x.shape
    hidden = weights["w_hh_t"].shape[0]
    c_pad = weights["w_cls_t"].shape[1]

    tb, padded = _pick_tile(batch, batch_tile)
    xi = x.astype(jnp.int32)
    if padded != batch:
        xi = jnp.pad(xi, ((0, padded - batch), (0, 0)))

    kernel = functools.partial(_logits_kernel, seq_len=seq_len, tb=tb)
    logits = pl.pallas_call(
        kernel,
        out_shape=jax.ShapeDtypeStruct((padded, c_pad), jnp.float32),
        grid=(padded // tb,),
        in_specs=[
            pl.BlockSpec((tb, seq_len), lambda i: (i, 0)),
            pl.BlockSpec((VOCAB_SIZE, hidden), lambda i: (0, 0)),
            pl.BlockSpec((hidden, hidden), lambda i: (0, 0)),
            pl.BlockSpec((hidden, c_pad), lambda i: (0, 0)),
            pl.BlockSpec((1, c_pad), lambda i: (0, 0)),
        ],
        out_specs=pl.BlockSpec((tb, c_pad), lambda i: (i, 0)),
        compiler_params=pltpu.CompilerParams(
            dimension_semantics=("parallel",)),
    )(xi, weights["w_fused"], weights["w_hh_t"], weights["w_cls_t"],
      weights["b_cls"])
    return logits[:batch, :num_classes]


@functools.partial(jax.jit, static_argnames=("num_classes", "batch_tile"))
def _forward_loss_jit(x, weights, y, num_classes, batch_tile=1024):
    batch, seq_len = x.shape
    hidden = weights["w_hh_t"].shape[0]
    c_pad = weights["w_cls_t"].shape[1]

    tb, padded = _pick_tile(batch, batch_tile)
    xi = x.astype(jnp.int32)
    yi = y.astype(jnp.int32).reshape(batch, 1)
    if padded != batch:
        xi = jnp.pad(xi, ((0, padded - batch), (0, 0)))
        yi = jnp.pad(yi, ((0, padded - batch), (0, 0)))
    n_tiles = padded // tb

    kernel = functools.partial(_loss_kernel, seq_len=seq_len, tb=tb,
                               num_classes=num_classes, batch=batch)
    partials = pl.pallas_call(
        kernel,
        out_shape=jax.ShapeDtypeStruct((n_tiles, 8, LANE), jnp.float32),
        grid=(n_tiles,),
        in_specs=[
            pl.BlockSpec((tb, seq_len), lambda i: (i, 0)),
            pl.BlockSpec((tb, 1), lambda i: (i, 0)),
            pl.BlockSpec((VOCAB_SIZE, hidden), lambda i: (0, 0)),
            pl.BlockSpec((hidden, hidden), lambda i: (0, 0)),
            pl.BlockSpec((hidden, c_pad), lambda i: (0, 0)),
            pl.BlockSpec((1, c_pad), lambda i: (0, 0)),
        ],
        out_specs=pl.BlockSpec((1, 8, LANE), lambda i: (i, 0, 0)),
        compiler_params=pltpu.CompilerParams(
            dimension_semantics=("parallel",)),
    )(xi, yi, weights["w_fused"], weights["w_hh_t"], weights["w_cls_t"],
      weights["b_cls"])
    return jnp.sum(partials[:, 0, 0]) / batch


def nlp_class_forward(x, prepared, y=None):
    """Pallas implementation of NlpClassModel.forward.

    x : (batch, seq) int token ids.
    y : optional (batch,) int labels; if given returns scalar mean CE loss,
        else returns (batch, sen_len+1) logits.
    """
    num_classes = prepared["num_classes"]
    weights = {k: v for k, v in prepared.items() if k != "num_classes"}
    if y is None:
        return _forward_logits_jit(x, weights, num_classes=num_classes)
    return _forward_loss_jit(x, weights, y, num_classes=num_classes)


if __name__ == "__main__":
    # Small shapes consistent with the module: 8 tokens/sample, vector_dim=16,
    # hidden_size=32, vocab=29 (fixed), classes = sen_len + 1 = 9.
    batch, sen_len, vector_dim, hidden_size = 2, 8, 16, 32

    key = jax.random.PRNGKey(0)
    pkey, xkey, ykey = jax.random.split(key, 3)
    params = init_params(pkey, vector_dim, hidden_size, sen_len)
    prepared = prepare_params(params)        # use_bf16=True for faster MXU path

    x = jax.random.randint(xkey, (batch, sen_len), 0, VOCAB_SIZE, jnp.int32)
    y = jax.random.randint(ykey, (batch,), 0, sen_len + 1, jnp.int32)

    logits = nlp_class_forward(x, prepared)          # y is None -> logits
    loss = nlp_class_forward(x, prepared, y)         # y given   -> mean CE loss
    jax.block_until_ready((logits, loss))

    assert logits.shape == (batch, sen_len + 1)
    assert loss.shape == ()
    assert bool(jnp.isfinite(loss))
    print("KERNEL_OK")
</pallas_src>

<mosaic_0001>
module attributes {stable_mosaic.version = 11 : i64} {
  func.func @_logits_kernel(%arg0: i32, %arg1: memref<8x8xi32, #tpu.memory_space<vmem>>, %arg2: memref<29x32xf32, #tpu.memory_space<vmem>>, %arg3: memref<32x32xf32, #tpu.memory_space<vmem>>, %arg4: memref<32x128xf32, #tpu.memory_space<vmem>>, %arg5: memref<1x128xf32, #tpu.memory_space<vmem>>, %arg6: memref<8x128xf32, #tpu.memory_space<vmem>>) attributes {dimension_semantics = [#tpu.dimension_semantics<parallel>], iteration_bounds = array<i64: 1>, scalar_prefetch = 0 : i64, scratch_operands = 0 : i64, tpu.core_type = #tpu.core_type<tc>, window_params = [{transform_indices = @transform_0, window_bounds = array<i64: 8, 8>}, {pipeline_mode = #tpu.pipeline_mode<synchronous>, transform_indices = @transform_1, window_bounds = array<i64: 29, 32>}, {pipeline_mode = #tpu.pipeline_mode<synchronous>, transform_indices = @transform_2, window_bounds = array<i64: 32, 32>}, {pipeline_mode = #tpu.pipeline_mode<synchronous>, transform_indices = @transform_3, window_bounds = array<i64: 32, 128>}, {pipeline_mode = #tpu.pipeline_mode<synchronous>, transform_indices = @transform_4, window_bounds = array<i64: 1, 128>}, {transform_indices = @transform_5, window_bounds = array<i64: 8, 128>}]} {
    %c0 = arith.constant 0 : index
    %c0_0 = arith.constant 0 : index
    %0 = vector.load %arg1[%c0, %c0_0] : memref<8x8xi32, #tpu.memory_space<vmem>>, vector<8x8xi32>
    %c0_1 = arith.constant 0 : index
    %c0_2 = arith.constant 0 : index
    %1 = vector.load %arg2[%c0_1, %c0_2] : memref<29x32xf32, #tpu.memory_space<vmem>>, vector<29x32xf32>
    %c0_3 = arith.constant 0 : index
    %c0_4 = arith.constant 0 : index
    %2 = vector.load %arg3[%c0_3, %c0_4] : memref<32x32xf32, #tpu.memory_space<vmem>>, vector<32x32xf32>
    %3 = tpu.iota {dimensions = array<i32: 1>} : vector<8x29xi32>
    %4 = vector.extract_strided_slice %0 {offsets = [0, 0], sizes = [8, 1], strides = [1, 1]} : vector<8x8xi32> to vector<8x1xi32>
    %5 = vector.broadcast %4 : vector<8x1xi32> to vector<8x29xi32>
    %6 = arith.cmpi eq, %5, %3 : vector<8x29xi32>
    %7 = arith.extui %6 : vector<8x29xi1> to vector<8x29xi32>
    %8 = arith.sitofp %7 : vector<8x29xi32> to vector<8x29xf32>
    %cst = arith.constant dense<0.000000e+00> : vector<8x32xf32>
    %9 = tpu.matmul %8, %1, %cst {dimension_numbers = #tpu.dot_dimension_numbers<[1], [0], [0], [1], [0, 0, 1, 1], [], []>} : vector<8x29xf32>, vector<29x32xf32>, vector<8x32xf32> -> vector<8x32xf32>
    %10 = vector.extract_strided_slice %0 {offsets = [0, 1], sizes = [8, 1], strides = [1, 1]} : vector<8x8xi32> to vector<8x1xi32>
    %11 = vector.broadcast %10 : vector<8x1xi32> to vector<8x29xi32>
    %12 = arith.cmpi eq, %11, %3 : vector<8x29xi32>
    %13 = arith.extui %12 : vector<8x29xi1> to vector<8x29xi32>
    %14 = arith.sitofp %13 : vector<8x29xi32> to vector<8x29xf32>
    %cst_5 = arith.constant dense<0.000000e+00> : vector<8x32xf32>
    %15 = tpu.matmul %14, %1, %cst_5 {dimension_numbers = #tpu.dot_dimension_numbers<[1], [0], [0], [1], [0, 0, 1, 1], [], []>} : vector<8x29xf32>, vector<29x32xf32>, vector<8x32xf32> -> vector<8x32xf32>
    %16 = vector.extract_strided_slice %0 {offsets = [0, 2], sizes = [8, 1], strides = [1, 1]} : vector<8x8xi32> to vector<8x1xi32>
    %17 = vector.broadcast %16 : vector<8x1xi32> to vector<8x29xi32>
    %18 = arith.cmpi eq, %17, %3 : vector<8x29xi32>
    %19 = arith.extui %18 : vector<8x29xi1> to vector<8x29xi32>
    %20 = arith.sitofp %19 : vector<8x29xi32> to vector<8x29xf32>
    %cst_6 = arith.constant dense<0.000000e+00> : vector<8x32xf32>
    %21 = tpu.matmul %20, %1, %cst_6 {dimension_numbers = #tpu.dot_dimension_numbers<[1], [0], [0], [1], [0, 0, 1, 1], [], []>} : vector<8x29xf32>, vector<29x32xf32>, vector<8x32xf32> -> vector<8x32xf32>
    %22 = vector.extract_strided_slice %0 {offsets = [0, 3], sizes = [8, 1], strides = [1, 1]} : vector<8x8xi32> to vector<8x1xi32>
    %23 = vector.broadcast %22 : vector<8x1xi32> to vector<8x29xi32>
    %24 = arith.cmpi eq, %23, %3 : vector<8x29xi32>
    %25 = arith.extui %24 : vector<8x29xi1> to vector<8x29xi32>
    %26 = arith.sitofp %25 : vector<8x29xi32> to vector<8x29xf32>
    %cst_7 = arith.constant dense<0.000000e+00> : vector<8x32xf32>
    %27 = tpu.matmul %26, %1, %cst_7 {dimension_numbers = #tpu.dot_dimension_numbers<[1], [0], [0], [1], [0, 0, 1, 1], [], []>} : vector<8x29xf32>, vector<29x32xf32>, vector<8x32xf32> -> vector<8x32xf32>
    %28 = vector.extract_strided_slice %0 {offsets = [0, 4], sizes = [8, 1], strides = [1, 1]} : vector<8x8xi32> to vector<8x1xi32>
    %29 = vector.broadcast %28 : vector<8x1xi32> to vector<8x29xi32>
    %30 = arith.cmpi eq, %29, %3 : vector<8x29xi32>
    %31 = arith.extui %30 : vector<8x29xi1> to vector<8x29xi32>
    %32 = arith.sitofp %31 : vector<8x29xi32> to vector<8x29xf32>
    %cst_8 = arith.constant dense<0.000000e+00> : vector<8x32xf32>
    %33 = tpu.matmul %32, %1, %cst_8 {dimension_numbers = #tpu.dot_dimension_numbers<[1], [0], [0], [1], [0, 0, 1, 1], [], []>} : vector<8x29xf32>, vector<29x32xf32>, vector<8x32xf32> -> vector<8x32xf32>
    %34 = vector.extract_strided_slice %0 {offsets = [0, 5], sizes = [8, 1], strides = [1, 1]} : vector<8x8xi32> to vector<8x1xi32>
    %35 = vector.broadcast %34 : vector<8x1xi32> to vector<8x29xi32>
    %36 = arith.cmpi eq, %35, %3 : vector<8x29xi32>
    %37 = arith.extui %36 : vector<8x29xi1> to vector<8x29xi32>
    %38 = arith.sitofp %37 : vector<8x29xi32> to vector<8x29xf32>
    %cst_9 = arith.constant dense<0.000000e+00> : vector<8x32xf32>
    %39 = tpu.matmul %38, %1, %cst_9 {dimension_numbers = #tpu.dot_dimension_numbers<[1], [0], [0], [1], [0, 0, 1, 1], [], []>} : vector<8x29xf32>, vector<29x32xf32>, vector<8x32xf32> -> vector<8x32xf32>
    %40 = vector.extract_strided_slice %0 {offsets = [0, 6], sizes = [8, 1], strides = [1, 1]} : vector<8x8xi32> to vector<8x1xi32>
    %41 = vector.broadcast %40 : vector<8x1xi32> to vector<8x29xi32>
    %42 = arith.cmpi eq, %41, %3 : vector<8x29xi32>
    %43 = arith.extui %42 : vector<8x29xi1> to vector<8x29xi32>
    %44 = arith.sitofp %43 : vector<8x29xi32> to vector<8x29xf32>
    %cst_10 = arith.constant dense<0.000000e+00> : vector<8x32xf32>
    %45 = tpu.matmul %44, %1, %cst_10 {dimension_numbers = #tpu.dot_dimension_numbers<[1], [0], [0], [1], [0, 0, 1, 1], [], []>} : vector<8x29xf32>, vector<29x32xf32>, vector<8x32xf32> -> vector<8x32xf32>
    %46 = vector.extract_strided_slice %0 {offsets = [0, 7], sizes = [8, 1], strides = [1, 1]} : vector<8x8xi32> to vector<8x1xi32>
    %47 = vector.broadcast %46 : vector<8x1xi32> to vector<8x29xi32>
    %48 = arith.cmpi eq, %47, %3 : vector<8x29xi32>
    %49 = arith.extui %48 : vector<8x29xi1> to vector<8x29xi32>
    %50 = arith.sitofp %49 : vector<8x29xi32> to vector<8x29xf32>
    %cst_11 = arith.constant dense<0.000000e+00> : vector<8x32xf32>
    %51 = tpu.matmul %50, %1, %cst_11 {dimension_numbers = #tpu.dot_dimension_numbers<[1], [0], [0], [1], [0, 0, 1, 1], [], []>} : vector<8x29xf32>, vector<29x32xf32>, vector<8x32xf32> -> vector<8x32xf32>
    %cst_12 = arith.constant 0.000000e+00 : f32
    %52 = vector.broadcast %cst_12 : f32 to vector<8x32xf32>
    %cst_13 = arith.constant dense<0.000000e+00> : vector<8x32xf32>
    %53 = tpu.matmul %52, %2, %cst_13 {dimension_numbers = #tpu.dot_dimension_numbers<[1], [0], [0], [1], [0, 0, 1, 1], [], []>} : vector<8x32xf32>, vector<32x32xf32>, vector<8x32xf32> -> vector<8x32xf32>
    %54 = arith.addf %9, %53 : vector<8x32xf32>
    %55 = math.tanh %54 : vector<8x32xf32>
    %cst_14 = arith.constant dense<0.000000e+00> : vector<8x32xf32>
    %56 = tpu.matmul %55, %2, %cst_14 {dimension_numbers = #tpu.dot_dimension_numbers<[1], [0], [0], [1], [0, 0, 1, 1], [], []>} : vector<8x32xf32>, vector<32x32xf32>, vector<8x32xf32> -> vector<8x32xf32>
    %57 = arith.addf %15, %56 : vector<8x32xf32>
    %58 = math.tanh %57 : vector<8x32xf32>
    %cst_15 = arith.constant dense<0.000000e+00> : vector<8x32xf32>
    %59 = tpu.matmul %58, %2, %cst_15 {dimension_numbers = #tpu.dot_dimension_numbers<[1], [0], [0], [1], [0, 0, 1, 1], [], []>} : vector<8x32xf32>, vector<32x32xf32>, vector<8x32xf32> -> vector<8x32xf32>
    %60 = arith.addf %21, %59 : vector<8x32xf32>
    %61 = math.tanh %60 : vector<8x32xf32>
    %cst_16 = arith.constant dense<0.000000e+00> : vector<8x32xf32>
    %62 = tpu.matmul %61, %2, %cst_16 {dimension_numbers = #tpu.dot_dimension_numbers<[1], [0], [0], [1], [0, 0, 1, 1], [], []>} : vector<8x32xf32>, vector<32x32xf32>, vector<8x32xf32> -> vector<8x32xf32>
    %63 = arith.addf %27, %62 : vector<8x32xf32>
    %64 = math.tanh %63 : vector<8x32xf32>
    %cst_17 = arith.constant dense<0.000000e+00> : vector<8x32xf32>
    %65 = tpu.matmul %64, %2, %cst_17 {dimension_numbers = #tpu.dot_dimension_numbers<[1], [0], [0], [1], [0, 0, 1, 1], [], []>} : vector<8x32xf32>, vector<32x32xf32>, vector<8x32xf32> -> vector<8x32xf32>
    %66 = arith.addf %33, %65 : vector<8x32xf32>
    %67 = math.tanh %66 : vector<8x32xf32>
    %cst_18 = arith.constant dense<0.000000e+00> : vector<8x32xf32>
    %68 = tpu.matmul %67, %2, %cst_18 {dimension_numbers = #tpu.dot_dimension_numbers<[1], [0], [0], [1], [0, 0, 1, 1], [], []>} : vector<8x32xf32>, vector<32x32xf32>, vector<8x32xf32> -> vector<8x32xf32>
    %69 = arith.addf %39, %68 : vector<8x32xf32>
    %70 = math.tanh %69 : vector<8x32xf32>
    %cst_19 = arith.constant dense<0.000000e+00> : vector<8x32xf32>
    %71 = tpu.matmul %70, %2, %cst_19 {dimension_numbers = #tpu.dot_dimension_numbers<[1], [0], [0], [1], [0, 0, 1, 1], [], []>} : vector<8x32xf32>, vector<32x32xf32>, vector<8x32xf32> -> vector<8x32xf32>
    %72 = arith.addf %45, %71 : vector<8x32xf32>
    %73 = math.tanh %72 : vector<8x32xf32>
    %cst_20 = arith.constant dense<0.000000e+00> : vector<8x32xf32>
    %74 = tpu.matmul %73, %2, %cst_20 {dimension_numbers = #tpu.dot_dimension_numbers<[1], [0], [0], [1], [0, 0, 1, 1], [], []>} : vector<8x32xf32>, vector<32x32xf32>, vector<8x32xf32> -> vector<8x32xf32>
    %75 = arith.addf %51, %74 : vector<8x32xf32>
    %76 = math.tanh %75 : vector<8x32xf32>
    %c0_21 = arith.constant 0 : index
    %c0_22 = arith.constant 0 : index
    %77 = vector.load %arg4[%c0_21, %c0_22] : memref<32x128xf32, #tpu.memory_space<vmem>>, vector<32x128xf32>
    %c0_23 = arith.constant 0 : index
    %c0_24 = arith.constant 0 : index
    %78 = vector.load %arg5[%c0_23, %c0_24] : memref<1x128xf32, #tpu.memory_space<vmem>>, vector<1x128xf32>
    %cst_25 = arith.constant dense<0.000000e+00> : vector<8x128xf32>
    %79 = tpu.matmul %76, %77, %cst_25 {dimension_numbers = #tpu.dot_dimension_numbers<[1], [0], [0], [1], [0, 0, 1, 1], [], []>} : vector<8x32xf32>, vector<32x128xf32>, vector<8x128xf32> -> vector<8x128xf32>
    %80 = vector.broadcast %78 : vector<1x128xf32> to vector<8x128xf32>
    %81 = arith.addf %79, %80 : vector<8x128xf32>
    %c0_26 = arith.constant 0 : index
    %c0_27 = arith.constant 0 : index
    %82 = vector.load %arg6[%c0_26, %c0_27] : memref<8x128xf32, #tpu.memory_space<vmem>>, vector<8x128xf32>
    tpu.vector_store %arg6[%c0_26, %c0_27], %81 {strides = array<i32>} : memref<8x128xf32, #tpu.memory_space<vmem>>, vector<8x128xf32>,
    return
  }
  func.func @transform_0(%arg0: i32) -> (i32, i32) {
    %c0_i32 = arith.constant 0 : i32
    %c0_i32_0 = arith.constant 0 : i32
    return %arg0, %c0_i32 : i32, i32
  }
  func.func @transform_1(%arg0: i32) -> (i32, i32) {
    %c0_i32 = arith.constant 0 : i32
    %c0_i32_0 = arith.constant 0 : i32
    %c0_i32_1 = arith.constant 0 : i32
    return %c0_i32, %c0_i32_0 : i32, i32
  }
  func.func @transform_2(%arg0: i32) -> (i32, i32) {
    %c0_i32 = arith.constant 0 : i32
    %c0_i32_0 = arith.constant 0 : i32
    %c0_i32_1 = arith.constant 0 : i32
    return %c0_i32, %c0_i32_0 : i32, i32
  }
  func.func @transform_3(%arg0: i32) -> (i32, i32) {
    %c0_i32 = arith.constant 0 : i32
    %c0_i32_0 = arith.constant 0 : i32
    %c0_i32_1 = arith.constant 0 : i32
    return %c0_i32, %c0_i32_0 : i32, i32
  }
  func.func @transform_4(%arg0: i32) -> (i32, i32) {
    %c0_i32 = arith.constant 0 : i32
    %c0_i32_0 = arith.constant 0 : i32
    %c0_i32_1 = arith.constant 0 : i32
    return %c0_i32, %c0_i32_0 : i32, i32
  }
  func.func @transform_5(%arg0: i32) -> (i32, i32) {
    %c0_i32 = arith.constant 0 : i32
    %c0_i32_0 = arith.constant 0 : i32
    return %arg0, %c0_i32 : i32, i32
  }
}

</mosaic_0001>

<llo_original>
// kernel: _forward_logits_jit.1
$region0: #{_forward_logits_jit.1}
  #allocation0 [shape = 'u32[]', space=smem, size = 0x4, offset = 0x4, fixed_abs, tag = 'smem constant byte address 0x4 - core index']
  #allocation1 [shape = 'u32[72,128]{1,0:T(1,128)}', space=vmem, size = 0x9000, scoped, tag = 'internal scratch']
  %s0 = inlined_call_operand.vmem [shape: s32[8,8], index: 0, kind: input, shape index: {}]
  %s1 = inlined_call_operand.hbm [shape: f32[29,32], index: 1, kind: input, shape index: {}]
  %s2 = inlined_call_operand.hbm [shape: f32[32,32], index: 2, kind: input, shape index: {}]
  %s3 = inlined_call_operand.hbm [shape: f32[32,128], index: 3, kind: input, shape index: {}]
  %s4 = inlined_call_operand.vmem [shape: f32[1,128], index: 4, kind: input, shape index: {}]
  %s5 = inlined_call_operand.vmem [shape: f32[8,128], index: 5, kind: output, shape index: {}]
  %s6 = sld [smem:[#allocation0]]
  $region42: #{_forward_logits_jit.1} parent=0
    _
  %s8 = ssub.s32 1, %s6
  %s9 = scalar_select 0, %s8, %s6
  $region1: #{_forward_logits_jit.1} parent=0
    #allocation2 [shape = 'u8[16384]{0}', space=vmem, size = 0x4000, scoped, tag = 'input window, operand 1, single buffered']
    #allocation3 [shape = 's32[1]{0}', space=sflag, size = 0x4, scoped, tag = 'scoped memory for _forward_logits_jit.1']
    #allocation4 [shape = 'u8[16384]{0}', space=vmem, size = 0x4000, scoped, tag = 'input window, operand 2, single buffered']
    #allocation5 [shape = 's32[1]{0}', space=sflag, size = 0x4, scoped, tag = 'scoped memory for _forward_logits_jit.1']
    #allocation6 [shape = 'u8[16384]{0}', space=vmem, size = 0x4000, scoped, tag = 'input window, operand 3, single buffered']
    %10 = vsyncpa [#allocation3], 0
    %11 = vsyncpa [#allocation5], 0
    // Predicated region
    $region2: #{_forward_logits_jit.1} parent=1 // pred_check
      _
    $region3: #{_forward_logits_jit.1} parent=1 // pred_check_branch
      %13 = sbr.rel (0) target = $region5
    $region4: #{_forward_logits_jit.1} parent=1 // pred_region
      _
    $region5: #{_forward_logits_jit.1} parent=1 // pred_fallthru
      _
    // Predicated region
    $region6: #{_forward_logits_jit.1} parent=1 // pred_check
      _
    $region7: #{_forward_logits_jit.1} parent=1 // pred_check_branch
      %15 = sbr.rel (0) target = $region9
    $region8: #{_forward_logits_jit.1} parent=1 // pred_region
      %17 = vsyncadd [#allocation3], 0
      %s18 = sshll.u32 %s1, 4
      %s19 = int_to_ptr.hbm [resolvable:$true] %s18
      %s20 = sshll.u32 [#allocation2], 4
      %s21 = int_to_ptr.vmem [resolvable:$true] %s20
      %26 = dma.hbm_to_vmem [thread:$0]  %s19, 512, %s21, [#allocation3], 128, 128, 8
    $region9: #{_forward_logits_jit.1} parent=1 // pred_fallthru
      _
    // Predicated region
    $region10: #{_forward_logits_jit.1} parent=1 // pred_check
      _
    $region11: #{_forward_logits_jit.1} parent=1 // pred_check_branch
      %28 = sbr.rel (0) target = $region13
    $region12: #{_forward_logits_jit.1} parent=1 // pred_region
      %30 = vsyncadd [#allocation5], 0
      %s31 = sshll.u32 %s2, 4
      %s32 = int_to_ptr.hbm [resolvable:$true] %s31
      %s33 = sshll.u32 [#allocation4], 4
      %s34 = int_to_ptr.vmem [resolvable:$true] %s33
      %39 = dma.hbm_to_vmem [thread:$0]  %s32, 512, %s34, [#allocation5], 128, 128, 8
    $region13: #{_forward_logits_jit.1} parent=1 // pred_fallthru
      _
    // Predicated region
    $region14: #{_forward_logits_jit.1} parent=1 // pred_check
      _
    $region15: #{_forward_logits_jit.1} parent=1 // pred_check_branch
      %41 = sbr.rel (0) target = $region17
    $region16: #{_forward_logits_jit.1} parent=1 // pred_region
      %43 = vsyncadd [#allocation5], 0
      %s44 = sshll.u32 %s3, 4
      %s45 = int_to_ptr.hbm [resolvable:$true] %s44
      %s46 = sshll.u32 [#allocation6], 4
      %s47 = int_to_ptr.vmem [resolvable:$true] %s46
      %52 = dma.hbm_to_vmem [thread:$0]  %s45, 512, %s47, [#allocation5], 128, 128, 8
    $region17: #{_forward_logits_jit.1} parent=1 // pred_fallthru
      _
    // Predicated region
    $region18: #{_forward_logits_jit.1} parent=1 // pred_check
      _
    $region19: #{_forward_logits_jit.1} parent=1 // pred_check_branch
      %54 = sbr.rel (0) target = $region21
    $region20: #{_forward_logits_jit.1} parent=1 // pred_region
      _
    $region21: #{_forward_logits_jit.1} parent=1 // pred_fallthru
      _
    // Predicated region
    $region22: #{_forward_logits_jit.1} parent=1 // pred_check
      _
    $region23: #{_forward_logits_jit.1} parent=1 // pred_check_branch
      %56 = sbr.rel (0) target = $region25
    $region24: #{_forward_logits_jit.1} parent=1 // pred_region
      %58 = dma.done [#allocation3], 512
    $region25: #{_forward_logits_jit.1} parent=1 // pred_fallthru
      _
    // Predicated region
    $region26: #{_forward_logits_jit.1} parent=1 // pred_check
      _
    $region27: #{_forward_logits_jit.1} parent=1 // pred_check_branch
      %60 = sbr.rel (0) target = $region29
    $region28: #{_forward_logits_jit.1} parent=1 // pred_region
      %62 = dma.done [#allocation5], 512
    $region29: #{_forward_logits_jit.1} parent=1 // pred_fallthru
      _
    // Predicated region
    $region30: #{_forward_logits_jit.1} parent=1 // pred_check
      _
    $region31: #{_forward_logits_jit.1} parent=1 // pred_check_branch
      %64 = sbr.rel (0) target = $region33
    $region32: #{_forward_logits_jit.1} parent=1 // pred_region
      %66 = dma.done [#allocation5], 512
    $region33: #{_forward_logits_jit.1} parent=1 // pred_fallthru
      _
    %v67 = vld [vmem:[%s0] sm:$0xff]
    %v68 = vld [vmem:[#allocation2] sm:$0xff]
    %v69 = vld [vmem:[#allocation2 + $0x8] sm:$0xff]
    %v70 = vld [vmem:[#allocation2 + $0x10] sm:$0xff]
    %v71 = vld [vmem:[#allocation2 + $0x18] sm:$0x1f]
    %v72 = vld [vmem:[#allocation4] sm:$0xff]
    %v73 = vld [vmem:[#allocation4 + $0x8] sm:$0xff]
    %v74 = vld [vmem:[#allocation4 + $0x10] sm:$0xff]
    %v75 = vld [vmem:[#allocation4 + $0x18] sm:$0xff]
    %v76 = vlaneseq
    %v77 = vand.u32 %v76, 127
    %78 = vset.pattern.permute.xlu0 0
    %79 = vperm.xlu0 %78, %v67
    %v80 = vpop.permute.xlu0 %79
    %vm81 = vcmp.eq.s32.totalorder %v80, %v77
    %v82 = vsel %vm81, 1, 0
    %v83 = vcvt.s32.f32 %v82
    %84 = vset.pattern.permute.xlu0 1
    %85 = vperm.xlu0 %84, %v67
    %v86 = vpop.permute.xlu0 %85
    %vm87 = vcmp.eq.s32.totalorder %v86, %v77
    %v88 = vsel %vm87, 1, 0
    %v89 = vcvt.s32.f32 %v88
    %90 = vset.pattern.permute.xlu0 2
    %91 = vperm.xlu0 %90, %v67
    %v92 = vpop.permute.xlu0 %91
    %vm93 = vcmp.eq.s32.totalorder %v92, %v77
    %v94 = vsel %vm93, 1, 0
    %v95 = vcvt.s32.f32 %v94
    %96 = vset.pattern.permute.xlu0 3
    %97 = vperm.xlu0 %96, %v67
    %v98 = vpop.permute.xlu0 %97
    %vm99 = vcmp.eq.s32.totalorder %v98, %v77
    %v100 = vsel %vm99, 1, 0
    %v101 = vcvt.s32.f32 %v100
    %102 = vset.pattern.permute.xlu0 4
    %103 = vperm.xlu0 %102, %v67
    %v104 = vpop.permute.xlu0 %103
    %vm105 = vcmp.eq.s32.totalorder %v104, %v77
    %v106 = vsel %vm105, 1, 0
    %v107 = vcvt.s32.f32 %v106
    %108 = vset.pattern.permute.xlu0 5
    %109 = vperm.xlu0 %108, %v67
    %v110 = vpop.permute.xlu0 %109
    %vm111 = vcmp.eq.s32.totalorder %v110, %v77
    %v112 = vsel %vm111, 1, 0
    %v113 = vcvt.s32.f32 %v112
    %114 = vset.pattern.permute.xlu0 6
    %115 = vperm.xlu0 %114, %v67
    %v116 = vpop.permute.xlu0 %115
    %vm117 = vcmp.eq.s32.totalorder %v116, %v77
    %v118 = vsel %vm117, 1, 0
    %v119 = vcvt.s32.f32 %v118
    %120 = vset.pattern.permute.xlu0 7
    %121 = vperm.xlu0 %120, %v67
    %v122 = vpop.permute.xlu0 %121
    %vm123 = vcmp.eq.s32.totalorder %v122, %v77
    %v124 = vsel %vm123, 1, 0
    %v125 = vcvt.s32.f32 %v124
    %vm126 = vcmask 261120
    %v128 = vsel %vm126, 0.0, 0
    %130 = vmatpush.msra.mxu0 0.0
    %131 = vmatpush.msra.mxu0 0.0
    %132 = vmatpush.msra.mxu0 0.0
    %133 = vmatpush.msra.mxu0 0.0
    %134 = vmatpush.msra.mxu0 0.0
    %135 = vmatpush.msra.mxu0 0.0
    %136 = vmatpush.msra.mxu0 0.0
    %137 = vmatpush.msra.mxu0 0.0
    %138 = vmatpush.msra.mxu0 0.0
    %139 = vmatpush.msra.mxu0 0.0
    %140 = vmatpush.msra.mxu0 0.0
    %141 = vmatpush.msra.mxu0 0.0
    %142 = vmatpush.msra.mxu0 %v75
    %143 = vmatpush.msra.mxu0 %v74
    %144 = vmatpush.msra.mxu0 %v73
    %145 = vmatpush.msra.mxu0 %v72
    %146 = vmatmul.f32.gmra.mxu0 %v128
    %v147 = vpop.f32.mrf.mxu0
    %v148 = vadd.f32 0.0, %v147
    %149 = vdwg.mxu0
    %vm150 = vcmask 236544
    %v152 = vsel %vm150, %v83, 0
    %vm154 = vcmask 1044480
    %v156 = vsel %vm154, %v71, 0
    %158 = vmatpush.msra.mxu0 0.0
    %159 = vmatpush.msra.mxu0 0.0
    %160 = vmatpush.msra.mxu0 0.0
    %161 = vmatpush.msra.mxu0 0.0
    %162 = vmatpush.msra.mxu0 0.0
    %163 = vmatpush.msra.mxu0 0.0
    %164 = vmatpush.msra.mxu0 0.0
    %165 = vmatpush.msra.mxu0 0.0
    %166 = vmatpush.msra.mxu0 0.0
    %167 = vmatpush.msra.mxu0 0.0
    %168 = vmatpush.msra.mxu0 0.0
    %169 = vmatpush.msra.mxu0 0.0
    %170 = vmatpush.msra.mxu0 %v156
    %171 = vmatpush.msra.mxu0 %v70
    %172 = vmatpush.msra.mxu0 %v69
    %173 = vmatpush.msra.mxu0 %v68
    %174 = vmatmul.f32.gmra.mxu0 %v152
    %v175 = vpop.f32.mrf.mxu0
    %v176 = vadd.f32 %v148, %v175
    %177 = vdwg.mxu0
    %v178 = vtanh.pop %v176
    %v180 = vsel %vm126, %v178, 0
    %182 = vmatpush.msra.mxu0 0.0
    %183 = vmatpush.msra.mxu0 0.0
    %184 = vmatpush.msra.mxu0 0.0
    %185 = vmatpush.msra.mxu0 0.0
    %186 = vmatpush.msra.mxu0 0.0
    %187 = vmatpush.msra.mxu0 0.0
    %188 = vmatpush.msra.mxu0 0.0
    %189 = vmatpush.msra.mxu0 0.0
    %190 = vmatpush.msra.mxu0 0.0
    %191 = vmatpush.msra.mxu0 0.0
    %192 = vmatpush.msra.mxu0 0.0
    %193 = vmatpush.msra.mxu0 0.0
    %194 = vmatpush.msra.mxu0 %v75
    %195 = vmatpush.msra.mxu0 %v74
    %196 = vmatpush.msra.mxu0 %v73
    %197 = vmatpush.msra.mxu0 %v72
    %198 = vmatmul.f32.gmra.mxu0 %v180
    %v199 = vpop.f32.mrf.mxu0
    %v200 = vadd.f32 0.0, %v199
    %201 = vdwg.mxu0
    %v203 = vsel %vm150, %v89, 0
    %205 = vmatpush.msra.mxu0 0.0
    %206 = vmatpush.msra.mxu0 0.0
    %207 = vmatpush.msra.mxu0 0.0
    %208 = vmatpush.msra.mxu0 0.0
    %209 = vmatpush.msra.mxu0 0.0
    %210 = vmatpush.msra.mxu0 0.0
    %211 = vmatpush.msra.mxu0 0.0
    %212 = vmatpush.msra.mxu0 0.0
    %213 = vmatpush.msra.mxu0 0.0
    %214 = vmatpush.msra.mxu0 0.0
    %215 = vmatpush.msra.mxu0 0.0
    %216 = vmatpush.msra.mxu0 0.0
    %217 = vmatpush.msra.mxu0 %v156
    %218 = vmatpush.msra.mxu0 %v70
    %219 = vmatpush.msra.mxu0 %v69
    %220 = vmatpush.msra.mxu0 %v68
    %221 = vmatmul.f32.gmra.mxu0 %v203
    %v222 = vpop.f32.mrf.mxu0
    %v223 = vadd.f32 %v200, %v222
    %224 = vdwg.mxu0
    %v225 = vtanh.pop %v223
    %v227 = vsel %vm126, %v225, 0
    %229 = vmatpush.msra.mxu0 0.0
    %230 = vmatpush.msra.mxu0 0.0
    %231 = vmatpush.msra.mxu0 0.0
    %232 = vmatpush.msra.mxu0 0.0
    %233 = vmatpush.msra.mxu0 0.0
    %234 = vmatpush.msra.mxu0 0.0
    %235 = vmatpush.msra.mxu0 0.0
    %236 = vmatpush.msra.mxu0 0.0
    %237 = vmatpush.msra.mxu0 0.0
    %238 = vmatpush.msra.mxu0 0.0
    %239 = vmatpush.msra.mxu0 0.0
    %240 = vmatpush.msra.mxu0 0.0
    %241 = vmatpush.msra.mxu0 %v75
    %242 = vmatpush.msra.mxu0 %v74
    %243 = vmatpush.msra.mxu0 %v73
    %244 = vmatpush.msra.mxu0 %v72
    %245 = vmatmul.f32.gmra.mxu0 %v227
    %v246 = vpop.f32.mrf.mxu0
    %v247 = vadd.f32 0.0, %v246
    %248 = vdwg.mxu0
    %v250 = vsel %vm150, %v95, 0
    %252 = vmatpush.msra.mxu0 0.0
    %253 = vmatpush.msra.mxu0 0.0
    %254 = vmatpush.msra.mxu0 0.0
    %255 = vmatpush.msra.mxu0 0.0
    %256 = vmatpush.msra.mxu0 0.0
    %257 = vmatpush.msra.mxu0 0.0
    %258 = vmatpush.msra.mxu0 0.0
    %259 = vmatpush.msra.mxu0 0.0
    %260 = vmatpush.msra.mxu0 0.0
    %261 = vmatpush.msra.mxu0 0.0
    %262 = vmatpush.msra.mxu0 0.0
    %263 = vmatpush.msra.mxu0 0.0
    %264 = vmatpush.msra.mxu0 %v156
    %265 = vmatpush.msra.mxu0 %v70
    %266 = vmatpush.msra.mxu0 %v69
    %267 = vmatpush.msra.mxu0 %v68
    %268 = vmatmul.f32.gmra.mxu0 %v250
    %v269 = vpop.f32.mrf.mxu0
    %v270 = vadd.f32 %v247, %v269
    %271 = vdwg.mxu0
    %v272 = vtanh.pop %v270
    %v274 = vsel %vm126, %v272, 0
    %276 = vmatpush.msra.mxu0 0.0
    %277 = vmatpush.msra.mxu0 0.0
    %278 = vmatpush.msra.mxu0 0.0
    %279 = vmatpush.msra.mxu0 0.0
    %280 = vmatpush.msra.mxu0 0.0
    %281 = vmatpush.msra.mxu0 0.0
    %282 = vmatpush.msra.mxu0 0.0
    %283 = vmatpush.msra.mxu0 0.0
    %284 = vmatpush.msra.mxu0 0.0
    %285 = vmatpush.msra.mxu0 0.0
    %286 = vmatpush.msra.mxu0 0.0
    %287 = vmatpush.msra.mxu0 0.0
    %288 = vmatpush.msra.mxu0 %v75
    %289 = vmatpush.msra.mxu0 %v74
    %290 = vmatpush.msra.mxu0 %v73
    %291 = vmatpush.msra.mxu0 %v72
    %292 = vmatmul.f32.gmra.mxu0 %v274
    %v293 = vpop.f32.mrf.mxu0
    %v294 = vadd.f32 0.0, %v293
    %295 = vdwg.mxu0
    %v297 = vsel %vm150, %v101, 0
    %299 = vmatpush.msra.mxu0 0.0
    %300 = vmatpush.msra.mxu0 0.0
    %301 = vmatpush.msra.mxu0 0.0
    %302 = vmatpush.msra.mxu0 0.0
    %303 = vmatpush.msra.mxu0 0.0
    %304 = vmatpush.msra.mxu0 0.0
    %305 = vmatpush.msra.mxu0 0.0
    %306 = vmatpush.msra.mxu0 0.0
    %307 = vmatpush.msra.mxu0 0.0
    %308 = vmatpush.msra.mxu0 0.0
    %309 = vmatpush.msra.mxu0 0.0
    %310 = vmatpush.msra.mxu0 0.0
    %311 = vmatpush.msra.mxu0 %v156
    %312 = vmatpush.msra.mxu0 %v70
    %313 = vmatpush.msra.mxu0 %v69
    %314 = vmatpush.msra.mxu0 %v68
    %315 = vmatmul.f32.gmra.mxu0 %v297
    %v316 = vpop.f32.mrf.mxu0
    %v317 = vadd.f32 %v294, %v316
    %318 = vdwg.mxu0
    %v319 = vtanh.pop %v317
    %v321 = vsel %vm126, %v319, 0
    %323 = vmatpush.msra.mxu0 0.0
    %324 = vmatpush.msra.mxu0 0.0
    %325 = vmatpush.msra.mxu0 0.0
    %326 = vmatpush.msra.mxu0 0.0
    %327 = vmatpush.msra.mxu0 0.0
    %328 = vmatpush.msra.mxu0 0.0
    %329 = vmatpush.msra.mxu0 0.0
    %330 = vmatpush.msra.mxu0 0.0
    %331 = vmatpush.msra.mxu0 0.0
    %332 = vmatpush.msra.mxu0 0.0
    %333 = vmatpush.msra.mxu0 0.0
    %334 = vmatpush.msra.mxu0 0.0
    %335 = vmatpush.msra.mxu0 %v75
    %336 = vmatpush.msra.mxu0 %v74
    %337 = vmatpush.msra.mxu0 %v73
    %338 = vmatpush.msra.mxu0 %v72
    %339 = vmatmul.f32.gmra.mxu0 %v321
    %v340 = vpop.f32.mrf.mxu0
    %v341 = vadd.f32 0.0, %v340
    %342 = vdwg.mxu0
    %v344 = vsel %vm150, %v107, 0
    %346 = vmatpush.msra.mxu0 0.0
    %347 = vmatpush.msra.mxu0 0.0
    %348 = vmatpush.msra.mxu0 0.0
    %349 = vmatpush.msra.mxu0 0.0
    %350 = vmatpush.msra.mxu0 0.0
    %351 = vmatpush.msra.mxu0 0.0
    %352 = vmatpush.msra.mxu0 0.0
    %353 = vmatpush.msra.mxu0 0.0
    %354 = vmatpush.msra.mxu0 0.0
    %355 = vmatpush.msra.mxu0 0.0
    %356 = vmatpush.msra.mxu0 0.0
    %357 = vmatpush.msra.mxu0 0.0
    %358 = vmatpush.msra.mxu0 %v156
    %359 = vmatpush.msra.mxu0 %v70
    %360 = vmatpush.msra.mxu0 %v69
    %361 = vmatpush.msra.mxu0 %v68
    %362 = vmatmul.f32.gmra.mxu0 %v344
    %v363 = vpop.f32.mrf.mxu0
    %v364 = vadd.f32 %v341, %v363
    %365 = vdwg.mxu0
    %v366 = vtanh.pop %v364
    %v368 = vsel %vm126, %v366, 0
    %370 = vmatpush.msra.mxu0 0.0
    %371 = vmatpush.msra.mxu0 0.0
    %372 = vmatpush.msra.mxu0 0.0
    %373 = vmatpush.msra.mxu0 0.0
    %374 = vmatpush.msra.mxu0 0.0
    %375 = vmatpush.msra.mxu0 0.0
    %376 = vmatpush.msra.mxu0 0.0
    %377 = vmatpush.msra.mxu0 0.0
    %378 = vmatpush.msra.mxu0 0.0
    %379 = vmatpush.msra.mxu0 0.0
    %380 = vmatpush.msra.mxu0 0.0
    %381 = vmatpush.msra.mxu0 0.0
    %382 = vmatpush.msra.mxu0 %v75
    %383 = vmatpush.msra.mxu0 %v74
    %384 = vmatpush.msra.mxu0 %v73
    %385 = vmatpush.msra.mxu0 %v72
    %386 = vmatmul.f32.gmra.mxu0 %v368
    %v387 = vpop.f32.mrf.mxu0
    %v388 = vadd.f32 0.0, %v387
    %389 = vdwg.mxu0
    %v391 = vsel %vm150, %v113, 0
    %393 = vmatpush.msra.mxu0 0.0
    %394 = vmatpush.msra.mxu0 0.0
    %395 = vmatpush.msra.mxu0 0.0
    %396 = vmatpush.msra.mxu0 0.0
    %397 = vmatpush.msra.mxu0 0.0
    %398 = vmatpush.msra.mxu0 0.0
    %399 = vmatpush.msra.mxu0 0.0
    %400 = vmatpush.msra.mxu0 0.0
    %401 = vmatpush.msra.mxu0 0.0
    %402 = vmatpush.msra.mxu0 0.0
    %403 = vmatpush.msra.mxu0 0.0
    %404 = vmatpush.msra.mxu0 0.0
    %405 = vmatpush.msra.mxu0 %v156
    %406 = vmatpush.msra.mxu0 %v70
    %407 = vmatpush.msra.mxu0 %v69
    %408 = vmatpush.msra.mxu0 %v68
    %409 = vmatmul.f32.gmra.mxu0 %v391
    %v410 = vpop.f32.mrf.mxu0
    %v411 = vadd.f32 %v388, %v410
    %412 = vdwg.mxu0
    %v413 = vtanh.pop %v411
    %v415 = vsel %vm126, %v413, 0
    %417 = vmatpush.msra.mxu0 0.0
    %418 = vmatpush.msra.mxu0 0.0
    %419 = vmatpush.msra.mxu0 0.0
    %420 = vmatpush.msra.mxu0 0.0
    %421 = vmatpush.msra.mxu0 0.0
    %422 = vmatpush.msra.mxu0 0.0
    %423 = vmatpush.msra.mxu0 0.0
    %424 = vmatpush.msra.mxu0 0.0
    %425 = vmatpush.msra.mxu0 0.0
    %426 = vmatpush.msra.mxu0 0.0
    %427 = vmatpush.msra.mxu0 0.0
    %428 = vmatpush.msra.mxu0 0.0
    %429 = vmatpush.msra.mxu0 %v75
    %430 = vmatpush.msra.mxu0 %v74
    %431 = vmatpush.msra.mxu0 %v73
    %432 = vmatpush.msra.mxu0 %v72
    %433 = vmatmul.f32.gmra.mxu0 %v415
    %v434 = vpop.f32.mrf.mxu0
    %v435 = vadd.f32 0.0, %v434
    %436 = vdwg.mxu0
    %v438 = vsel %vm150, %v119, 0
    %440 = vmatpush.msra.mxu0 0.0
    %441 = vmatpush.msra.mxu0 0.0
    %442 = vmatpush.msra.mxu0 0.0
    %443 = vmatpush.msra.mxu0 0.0
    %444 = vmatpush.msra.mxu0 0.0
    %445 = vmatpush.msra.mxu0 0.0
    %446 = vmatpush.msra.mxu0 0.0
    %447 = vmatpush.msra.mxu0 0.0
    %448 = vmatpush.msra.mxu0 0.0
    %449 = vmatpush.msra.mxu0 0.0
    %450 = vmatpush.msra.mxu0 0.0
    %451 = vmatpush.msra.mxu0 0.0
    %452 = vmatpush.msra.mxu0 %v156
    %453 = vmatpush.msra.mxu0 %v70
    %454 = vmatpush.msra.mxu0 %v69
    %455 = vmatpush.msra.mxu0 %v68
    %456 = vmatmul.f32.gmra.mxu0 %v438
    %v457 = vpop.f32.mrf.mxu0
    %v458 = vadd.f32 %v435, %v457
    %459 = vdwg.mxu0
    %v460 = vtanh.pop %v458
    %v462 = vsel %vm126, %v460, 0
    %464 = vmatpush.msra.mxu0 0.0
    %465 = vmatpush.msra.mxu0 0.0
    %466 = vmatpush.msra.mxu0 0.0
    %467 = vmatpush.msra.mxu0 0.0
    %468 = vmatpush.msra.mxu0 0.0
    %469 = vmatpush.msra.mxu0 0.0
    %470 = vmatpush.msra.mxu0 0.0
    %471 = vmatpush.msra.mxu0 0.0
    %472 = vmatpush.msra.mxu0 0.0
    %473 = vmatpush.msra.mxu0 0.0
    %474 = vmatpush.msra.mxu0 0.0
    %475 = vmatpush.msra.mxu0 0.0
    %476 = vmatpush.msra.mxu0 %v75
    %477 = vmatpush.msra.mxu0 %v74
    %478 = vmatpush.msra.mxu0 %v73
    %479 = vmatpush.msra.mxu0 %v72
    %480 = vmatmul.f32.gmra.mxu0 %v462
    %v481 = vpop.f32.mrf.mxu0
    %v482 = vadd.f32 0.0, %v481
    %483 = vdwg.mxu0
    %v485 = vsel %vm150, %v125, 0
    %487 = vmatpush.msra.mxu0 0.0
    %488 = vmatpush.msra.mxu0 0.0
    %489 = vmatpush.msra.mxu0 0.0
    %490 = vmatpush.msra.mxu0 0.0
    %491 = vmatpush.msra.mxu0 0.0
    %492 = vmatpush.msra.mxu0 0.0
    %493 = vmatpush.msra.mxu0 0.0
    %494 = vmatpush.msra.mxu0 0.0
    %495 = vmatpush.msra.mxu0 0.0
    %496 = vmatpush.msra.mxu0 0.0
    %497 = vmatpush.msra.mxu0 0.0
    %498 = vmatpush.msra.mxu0 0.0
    %499 = vmatpush.msra.mxu0 %v156
    %500 = vmatpush.msra.mxu0 %v70
    %501 = vmatpush.msra.mxu0 %v69
    %502 = vmatpush.msra.mxu0 %v68
    %503 = vmatmul.f32.gmra.mxu0 %v485
    %v504 = vpop.f32.mrf.mxu0
    %v505 = vadd.f32 %v482, %v504
    %506 = vdwg.mxu0
    %v507 = vtanh.pop %v505
    %v508 = vld [vmem:[#allocation6] sm:$0xff]
    %v509 = vld [vmem:[#allocation6 + $0x8] sm:$0xff]
    %v510 = vld [vmem:[#allocation6 + $0x10] sm:$0xff]
    %v511 = vld [vmem:[#allocation6 + $0x18] sm:$0xff]
    %v512 = vld [vmem:[%s4] sm:$0x1]
    %v514 = vperm.slane %v512, 0
    %v517 = vsel %vm126, %v507, 0
    %519 = vmatpush.msra.mxu0 0.0
    %520 = vmatpush.msra.mxu0 0.0
    %521 = vmatpush.msra.mxu0 0.0
    %522 = vmatpush.msra.mxu0 0.0
    %523 = vmatpush.msra.mxu0 0.0
    %524 = vmatpush.msra.mxu0 0.0
    %525 = vmatpush.msra.mxu0 0.0
    %526 = vmatpush.msra.mxu0 0.0
    %527 = vmatpush.msra.mxu0 0.0
    %528 = vmatpush.msra.mxu0 0.0
    %529 = vmatpush.msra.mxu0 0.0
    %530 = vmatpush.msra.mxu0 0.0
    %531 = vmatpush.msra.mxu0 %v511
    %532 = vmatpush.msra.mxu0 %v510
    %533 = vmatpush.msra.mxu0 %v509
    %534 = vmatpush.msra.mxu0 %v508
    %535 = vmatmul.f32.gmra.mxu0 %v517
    %v536 = vpop.f32.mrf.mxu0
    %v537 = vadd.f32 %v514, %v536
    %538 = vdwg.mxu0
    %539 = vst [vmem:[%s5] sm:$0xff] %v537
    // Predicated region
    $region34: #{_forward_logits_jit.1} parent=1 // pred_check
      _
    $region35: #{_forward_logits_jit.1} parent=1 // pred_check_branch
      %541 = sbr.rel (0) target = $region37
    $region36: #{_forward_logits_jit.1} parent=1 // pred_region
      _
    $region37: #{_forward_logits_jit.1} parent=1 // pred_fallthru
      _
    // Predicated region
    $region38: #{_forward_logits_jit.1} parent=1 // pred_check
      _
    $region39: #{_forward_logits_jit.1} parent=1 // pred_check_branch
      %543 = sbr.rel (0) target = $region41
    $region40: #{_forward_logits_jit.1} parent=1 // pred_region
      _
    $region41: #{_forward_logits_jit.1} parent=1 // pred_fallthru
      _
    %544 = vsyncpa [#allocation3], 1
    %545 = vsyncpa [#allocation5], 1

</llo_original>
